<compile_context>
chip_gen: v6e
topology: v6e:2x2x1
jax: 0.10.0
libtpu: 0.0.40
codegen_flags: <defaults>
</compile_context>

<pallas_src>
import functools

import jax
import jax.numpy as jnp
from jax import lax
from jax.experimental import pallas as pl
from jax.experimental.pallas import tpu as pltpu


_VMEM_LIMIT_BYTES = 28 * 1024 * 1024       # safe on v5e/v6e (128 MiB) and v7x (64 MiB/TC)
_RESIDENT_WEIGHT_BYTES = 8 * 1024 * 1024   # weight-resident fast-path threshold
_RESIDENT_STEP_BUDGET = 24 * 1024 * 1024   # per-step VMEM budget (double-buffered x/out + weight)


def _round_up(v, m):
    return -(-v // m) * m


# --------------------------------------------------------------------------
# Path 1 kernel: weight fully VMEM-resident, 1-D grid over batch tiles.
# --------------------------------------------------------------------------
def _resident_kernel(x_ref, w_ref, b_ref, o_ref):
    # x_ref: (tm, in_dim)  w_ref: (out_dim, in_dim)  b_ref: (1, out_dim)
    # nn.Linear: contract the last dim of x with the last dim of W
    # (weight kept in PyTorch layout; no transposed copy in HBM).
    acc = lax.dot_general(
        x_ref[...], w_ref[...],
        dimension_numbers=(((1,), (1,)), ((), ())),
        preferred_element_type=jnp.float32,
    )
    o_ref[...] = (acc + b_ref[...].astype(jnp.float32)).astype(o_ref.dtype)


# --------------------------------------------------------------------------
# Path 2 kernel: tiled (M, N, K) grid for weights too large for VMEM.
# Accumulates directly into the f32 output block (K-invariant => VMEM resident).
# --------------------------------------------------------------------------
def _tiled_kernel(x_ref, w_ref, b_ref, o_ref, *, k_rem):
    k = pl.program_id(2)
    nk = pl.num_programs(2)

    @pl.when(k == 0)
    def _init():
        o_ref[...] = jnp.zeros_like(o_ref)

    x = x_ref[...]
    w = w_ref[...]
    if k_rem:  # static: in_dim % tk != 0 -> mask undefined K-tail block padding
        not_tail = k != nk - 1
        keep_x = lax.broadcasted_iota(jnp.int32, x.shape, 1) < k_rem
        keep_w = lax.broadcasted_iota(jnp.int32, w.shape, 1) < k_rem
        x = jnp.where(jnp.logical_or(not_tail, keep_x), x, 0)
        w = jnp.where(jnp.logical_or(not_tail, keep_w), w, 0)

    o_ref[...] += lax.dot_general(
        x, w,
        dimension_numbers=(((1,), (1,)), ((), ())),
        preferred_element_type=jnp.float32,
    )

    @pl.when(k == nk - 1)
    def _finalize():
        o_ref[...] += b_ref[...].astype(o_ref.dtype)  # bias added exactly once


# --------------------------------------------------------------------------
# Wrapper: y = x @ weight.T + bias  (exact nn.Linear semantics).
# --------------------------------------------------------------------------
def single_layer_regressor(x, weight, bias, *, tm=512, tn=512, tk=1024,
                           compute_dtype=None):
    """x: [B, in_dim], weight: [out_dim, in_dim] (PyTorch layout), bias: [out_dim]."""
    B, in_dim = x.shape
    out_dim = weight.shape[0]
    out_dtype = x.dtype

    if compute_dtype is not None:
        # bf16 inputs are MXU-native on v6e/v7x and halve HBM traffic;
        # accumulation stays f32 via preferred_element_type.
        x = x.astype(compute_dtype)
        weight = weight.astype(compute_dtype)

    b2d = bias.reshape(1, out_dim).astype(jnp.float32)

    x_bytes = jnp.dtype(x.dtype).itemsize
    w_bytes = jnp.dtype(weight.dtype).itemsize
    o_bytes = jnp.dtype(out_dtype).itemsize

    resident_bytes = out_dim * in_dim * w_bytes + out_dim * 4

    # ---------------- Path 1: weight-resident, single pass over x ----------
    if resident_bytes <= _RESIDENT_WEIGHT_BYTES:
        tm_r = min(tm, B)
        # Keep >= 2 batch blocks when B is modest so both v7x TCs get work.
        if B > 256 and pl.cdiv(B, tm_r) < 2:
            tm_r = _round_up(pl.cdiv(B, 2), 128)

        def step_bytes(t):  # double-buffered x + out tiles + resident weight/bias
            return 2 * t * (in_dim * x_bytes + out_dim * o_bytes) + resident_bytes

        while tm_r > 8 and step_bytes(tm_r) > _RESIDENT_STEP_BUDGET:
            tm_r = max(8, _round_up(tm_r // 2, 8))

        if step_bytes(tm_r) <= _RESIDENT_STEP_BUDGET:
            cost = pl.CostEstimate(
                flops=2 * B * in_dim * out_dim,
                bytes_accessed=(x.size * x_bytes + weight.size * w_bytes
                                + b2d.size * 4 + B * out_dim * o_bytes),
                transcendentals=0,
            )
            return pl.pallas_call(
                _resident_kernel,
                out_shape=jax.ShapeDtypeStruct((B, out_dim), out_dtype),
                grid_spec=pltpu.PrefetchScalarGridSpec(
                    num_scalar_prefetch=0,
                    grid=(pl.cdiv(B, tm_r),),
                    in_specs=[
                        pl.BlockSpec((tm_r, in_dim), lambda i: (i, 0)),     # x streams
                        pl.BlockSpec((out_dim, in_dim), lambda i: (0, 0)),  # W resident
                        pl.BlockSpec((1, out_dim), lambda i: (0, 0)),       # b resident
                    ],
                    out_specs=pl.BlockSpec((tm_r, out_dim), lambda i: (i, 0)),
                ),
                compiler_params=pltpu.CompilerParams(
                    dimension_semantics=("parallel",),
                    vmem_limit_bytes=_VMEM_LIMIT_BYTES,
                ),
                cost_estimate=cost,
            )(x, weight, b2d)

    # ---------------- Path 2: tiled (M, N, K) grid --------------------------
    tm_t = min(tm, B)
    tn_t = min(tn, out_dim)
    tk_t = min(tk, in_dim)
    grid = (pl.cdiv(B, tm_t), pl.cdiv(out_dim, tn_t), pl.cdiv(in_dim, tk_t))
    k_rem = in_dim % tk_t

    cost = pl.CostEstimate(
        flops=2 * B * in_dim * out_dim,
        bytes_accessed=(x.size * x_bytes * grid[1]          # x re-read per N block
                        + weight.size * w_bytes * grid[0]   # W re-read per M block
                        + b2d.size * 4 + B * out_dim * 4),
        transcendentals=0,
    )
    out_f32 = pl.pallas_call(
        functools.partial(_tiled_kernel, k_rem=k_rem),
        out_shape=jax.ShapeDtypeStruct((B, out_dim), jnp.float32),
        grid_spec=pltpu.PrefetchScalarGridSpec(
            num_scalar_prefetch=0,
            grid=grid,
            in_specs=[
                pl.BlockSpec((tm_t, tk_t), lambda i, j, k: (i, k)),   # x tile
                pl.BlockSpec((tn_t, tk_t), lambda i, j, k: (j, k)),   # W tile (PyTorch layout)
                pl.BlockSpec((1, tn_t), lambda i, j, k: (0, j)),      # bias tile
            ],
            out_specs=pl.BlockSpec((tm_t, tn_t), lambda i, j, k: (i, j)),
        ),
        compiler_params=pltpu.CompilerParams(
            dimension_semantics=("parallel", "parallel", "arbitrary"),
            vmem_limit_bytes=_VMEM_LIMIT_BYTES,
        ),
        cost_estimate=cost,
    )(x, weight, b2d)
    return out_f32.astype(out_dtype)


if __name__ == "__main__":
    # Small shapes consistent with the module: config.in_dim=32, config.out_dim=8.
    batch, in_dim, out_dim = 8, 32, 8

    key = jax.random.PRNGKey(0)
    kx, kw, kb = jax.random.split(key, 3)

    # Deterministic parameter init mirroring initialize_weights():
    # xavier_normal_ for the weight, uniform_ for the bias.
    xavier_std = (2.0 / (in_dim + out_dim)) ** 0.5
    weight = jax.random.normal(kw, (out_dim, in_dim), jnp.float32) * xavier_std
    bias = jax.random.uniform(kb, (out_dim,), jnp.float32)

    x = jax.random.normal(kx, (batch, in_dim), jnp.float32)

    y = single_layer_regressor(x, weight, bias)
    y = jax.block_until_ready(y)

    # Pure-JAX reference check (exact nn.Linear semantics).
    y_ref = x @ weight.T + bias
    assert y.shape == (batch, out_dim)
    assert jnp.allclose(y, y_ref, atol=1e-5, rtol=1e-5)

    print("KERNEL_OK")
</pallas_src>

<mosaic_0001>
module attributes {stable_mosaic.version = 11 : i64} {
  func.func @_resident_kernel(%arg0: i32, %arg1: memref<8x32xf32, #tpu.memory_space<vmem>>, %arg2: memref<8x32xf32, #tpu.memory_space<vmem>>, %arg3: memref<1x8xf32, #tpu.memory_space<vmem>>, %arg4: memref<8x8xf32, #tpu.memory_space<vmem>>) attributes {dimension_semantics = [#tpu.dimension_semantics<parallel>], iteration_bounds = array<i64: 1>, scalar_prefetch = 0 : i64, scratch_operands = 0 : i64, tpu.core_type = #tpu.core_type<tc>, window_params = [{transform_indices = @transform_0, window_bounds = array<i64: 8, 32>}, {pipeline_mode = #tpu.pipeline_mode<synchronous>, transform_indices = @transform_1, window_bounds = array<i64: 8, 32>}, {pipeline_mode = #tpu.pipeline_mode<synchronous>, transform_indices = @transform_2, window_bounds = array<i64: 1, 8>}, {transform_indices = @transform_3, window_bounds = array<i64: 8, 8>}]} {
    %c0 = arith.constant 0 : index
    %c0_0 = arith.constant 0 : index
    %0 = vector.load %arg1[%c0, %c0_0] : memref<8x32xf32, #tpu.memory_space<vmem>>, vector<8x32xf32>
    %c0_1 = arith.constant 0 : index
    %c0_2 = arith.constant 0 : index
    %1 = vector.load %arg2[%c0_1, %c0_2] : memref<8x32xf32, #tpu.memory_space<vmem>>, vector<8x32xf32>
    %cst = arith.constant dense<0.000000e+00> : vector<8x8xf32>
    %2 = tpu.matmul %0, %1, %cst {dimension_numbers = #tpu.dot_dimension_numbers<[1], [1], [0], [0], [0, 0, 1, 0], [], []>} : vector<8x32xf32>, vector<8x32xf32>, vector<8x8xf32> -> vector<8x8xf32>
    %c0_3 = arith.constant 0 : index
    %c0_4 = arith.constant 0 : index
    %3 = vector.load %arg3[%c0_3, %c0_4] : memref<1x8xf32, #tpu.memory_space<vmem>>, vector<1x8xf32>
    %4 = vector.broadcast %3 : vector<1x8xf32> to vector<8x8xf32>
    %5 = arith.addf %2, %4 : vector<8x8xf32>
    %c0_5 = arith.constant 0 : index
    %c0_6 = arith.constant 0 : index
    %6 = vector.load %arg4[%c0_5, %c0_6] : memref<8x8xf32, #tpu.memory_space<vmem>>, vector<8x8xf32>
    tpu.vector_store %arg4[%c0_5, %c0_6], %5 {strides = array<i32>} : memref<8x8xf32, #tpu.memory_space<vmem>>, vector<8x8xf32>,
    return
  }
  func.func @transform_0(%arg0: i32) -> (i32, i32) {
    %c0_i32 = arith.constant 0 : i32
    %c0_i32_0 = arith.constant 0 : i32
    return %arg0, %c0_i32 : i32, i32
  }
  func.func @transform_1(%arg0: i32) -> (i32, i32) {
    %c0_i32 = arith.constant 0 : i32
    %c0_i32_0 = arith.constant 0 : i32
    %c0_i32_1 = arith.constant 0 : i32
    return %c0_i32, %c0_i32_0 : i32, i32
  }
  func.func @transform_2(%arg0: i32) -> (i32, i32) {
    %c0_i32 = arith.constant 0 : i32
    %c0_i32_0 = arith.constant 0 : i32
    %c0_i32_1 = arith.constant 0 : i32
    return %c0_i32, %c0_i32_0 : i32, i32
  }
  func.func @transform_3(%arg0: i32) -> (i32, i32) {
    %c0_i32 = arith.constant 0 : i32
    %c0_i32_0 = arith.constant 0 : i32
    return %arg0, %c0_i32 : i32, i32
  }
}

</mosaic_0001>

<llo_original>
// kernel: tpu_custom_call.1
$region0: #{tpu_custom_call.1}
  #allocation0 [shape = 'u32[]', space=smem, size = 0x4, offset = 0x4, fixed_abs, tag = 'smem constant byte address 0x4 - core index']
  #allocation1 [shape = 'u32[144,128]{1,0:T(1,128)}', space=vmem, size = 0x12000, scoped, tag = 'internal scratch']
  %s0 = inlined_call_operand.hbm [shape: f32[8,32], index: 0, kind: input, shape index: {}]
  %s1 = inlined_call_operand.hbm [shape: f32[8,32], index: 1, kind: input, shape index: {}]
  %s2 = inlined_call_operand.vmem [shape: f32[1,8], index: 2, kind: input, shape index: {}]
  %s3 = inlined_call_operand.hbm [shape: f32[8,8], index: 3, kind: output, shape index: {}]
  %s4 = sld [smem:[#allocation0]]
  $region30: #{tpu_custom_call.1} parent=0
    _
  %s6 = ssub.s32 1, %s4
  %s7 = scalar_select 0, %s6, %s4
  $region1: #{tpu_custom_call.1} parent=0
    #allocation2 [shape = 'u8[4096]{0}', space=vmem, size = 0x1000, scoped, tag = 'input window, operand 0, single buffered']
    #allocation3 [shape = 's32[1]{0}', space=sflag, size = 0x4, scoped, tag = 'scoped memory for tpu_custom_call.1']
    #allocation4 [shape = 's32[1]{0}', space=sflag, size = 0x4, scoped, tag = 'scoped memory for tpu_custom_call.1']
    #allocation5 [shape = 'u8[4096]{0}', space=vmem, size = 0x1000, scoped, tag = 'input window, operand 1, single buffered']
    #allocation6 [shape = 's32[1]{0}', space=sflag, size = 0x4, scoped, tag = 'scoped memory for tpu_custom_call.1']
    #allocation7 [shape = 'u8[4096]{0}', space=vmem, size = 0x1000, scoped, tag = 'output window, operand 0, single buffered']
    %8 = vsyncpa [#allocation3], 0
    %9 = vsyncpa [#allocation6], 0
    %10 = vsyncpa [#allocation4], 0
    // Predicated region
    $region2: #{tpu_custom_call.1} parent=1 // pred_check
      _
    $region3: #{tpu_custom_call.1} parent=1 // pred_check_branch
      %12 = sbr.rel (0) target = $region5
    $region4: #{tpu_custom_call.1} parent=1 // pred_region
      %s14 = ssub.s32 128, 128
      %15 = vsyncadd [#allocation3], %s14
      %s17 = sshll.u32 [#allocation2], 4
      %s18 = int_to_ptr.vmem [resolvable:$true] %s17
      %20 = dma.hbm_to_vmem [thread:$0]  %s0, 128, %s18, [#allocation3]
    $region5: #{tpu_custom_call.1} parent=1 // pred_fallthru
      _
    // Predicated region
    $region6: #{tpu_custom_call.1} parent=1 // pred_check
      _
    $region7: #{tpu_custom_call.1} parent=1 // pred_check_branch
      %22 = sbr.rel (0) target = $region9
    $region8: #{tpu_custom_call.1} parent=1 // pred_region
      %s24 = ssub.s32 128, 128
      %25 = vsyncadd [#allocation6], %s24
      %s27 = sshll.u32 [#allocation5], 4
      %s28 = int_to_ptr.vmem [resolvable:$true] %s27
      %30 = dma.hbm_to_vmem [thread:$0]  %s1, 128, %s28, [#allocation6]
    $region9: #{tpu_custom_call.1} parent=1 // pred_fallthru
      _
    // Predicated region
    $region10: #{tpu_custom_call.1} parent=1 // pred_check
      _
    $region11: #{tpu_custom_call.1} parent=1 // pred_check_branch
      %32 = sbr.rel (0) target = $region13
    $region12: #{tpu_custom_call.1} parent=1 // pred_region
      _
    $region13: #{tpu_custom_call.1} parent=1 // pred_fallthru
      _
    // Predicated region
    $region14: #{tpu_custom_call.1} parent=1 // pred_check
      _
    $region15: #{tpu_custom_call.1} parent=1 // pred_check_branch
      %34 = sbr.rel (0) target = $region17
    $region16: #{tpu_custom_call.1} parent=1 // pred_region
      %35 = dma.done [#allocation3], 128
    $region17: #{tpu_custom_call.1} parent=1 // pred_fallthru
      _
    // Predicated region
    $region18: #{tpu_custom_call.1} parent=1 // pred_check
      _
    $region19: #{tpu_custom_call.1} parent=1 // pred_check_branch
      %37 = sbr.rel (0) target = $region21
    $region20: #{tpu_custom_call.1} parent=1 // pred_region
      %38 = dma.done [#allocation6], 128
    $region21: #{tpu_custom_call.1} parent=1 // pred_fallthru
      _
    %v39 = vld [vmem:[#allocation2] sm:$0xff]
    %v40 = vld [vmem:[#allocation5] sm:$0xff]
    %v41 = vld [vmem:[%s2] sm:$0x1]
    %v43 = vlaneseq
    %v44 = vshrl.u32 %v43, 7
    %v45 = vsub.s32 0, %v44
    %v46 = vrot.slane %v41, %v45
    %vm48 = vcmask 261120
    %v50 = vsel %vm48, %v39, 0
    %v53 = vsel %vm48, %v40, 0
    %55 = vmatprep.subr.mxu0 0.0
    %56 = vmatpush1.xpose.msra.mxu0 0.0
    %57 = vmatprep.subr.mxu0 0.0
    %58 = vmatpush1.xpose.msra.mxu0 0.0
    %59 = vmatprep.subr.mxu0 0.0
    %60 = vmatpush1.xpose.msra.mxu0 0.0
    %61 = vmatprep.subr.mxu0 0.0
    %62 = vmatpush1.xpose.msra.mxu0 0.0
    %63 = vmatprep.subr.mxu0 0.0
    %64 = vmatpush1.xpose.msra.mxu0 0.0
    %65 = vmatprep.subr.mxu0 0.0
    %66 = vmatpush1.xpose.msra.mxu0 0.0
    %67 = vmatprep.subr.mxu0 0.0
    %68 = vmatpush1.xpose.msra.mxu0 0.0
    %69 = vmatprep.subr.mxu0 0.0
    %70 = vmatpush1.xpose.msra.mxu0 0.0
    %71 = vmatprep.subr.mxu0 0.0
    %72 = vmatpush1.xpose.msra.mxu0 0.0
    %73 = vmatprep.subr.mxu0 0.0
    %74 = vmatpush1.xpose.msra.mxu0 0.0
    %75 = vmatprep.subr.mxu0 0.0
    %76 = vmatpush1.xpose.msra.mxu0 0.0
    %77 = vmatprep.subr.mxu0 0.0
    %78 = vmatpush1.xpose.msra.mxu0 0.0
    %79 = vmatprep.subr.mxu0 0.0
    %80 = vmatpush1.xpose.msra.mxu0 0.0
    %81 = vmatprep.subr.mxu0 0.0
    %82 = vmatpush1.xpose.msra.mxu0 0.0
    %83 = vmatprep.subr.mxu0 0.0
    %84 = vmatpush1.xpose.msra.mxu0 0.0
    %85 = vmatprep.subr.mxu0 0.0
    %86 = vmatpush1.xpose.msra.mxu0 %v53
    %87 = vmatprep.subr.mxu0 0.0
    %88 = vmatpush2.xpose.msra.mxu0 0.0
    %89 = vmatprep.subr.mxu0 0.0
    %90 = vmatpush2.xpose.msra.mxu0 0.0
    %91 = vmatprep.subr.mxu0 0.0
    %92 = vmatpush2.xpose.msra.mxu0 0.0
    %93 = vmatprep.subr.mxu0 0.0
    %94 = vmatpush2.xpose.msra.mxu0 0.0
    %95 = vmatprep.subr.mxu0 0.0
    %96 = vmatpush2.xpose.msra.mxu0 0.0
    %97 = vmatprep.subr.mxu0 0.0
    %98 = vmatpush2.xpose.msra.mxu0 0.0
    %99 = vmatprep.subr.mxu0 0.0
    %100 = vmatpush2.xpose.msra.mxu0 0.0
    %101 = vmatprep.subr.mxu0 0.0
    %102 = vmatpush2.xpose.msra.mxu0 0.0
    %103 = vmatprep.subr.mxu0 0.0
    %104 = vmatpush2.xpose.msra.mxu0 0.0
    %105 = vmatprep.subr.mxu0 0.0
    %106 = vmatpush2.xpose.msra.mxu0 0.0
    %107 = vmatprep.subr.mxu0 0.0
    %108 = vmatpush2.xpose.msra.mxu0 0.0
    %109 = vmatprep.subr.mxu0 0.0
    %110 = vmatpush2.xpose.msra.mxu0 0.0
    %111 = vmatprep.subr.mxu0 0.0
    %112 = vmatpush2.xpose.msra.mxu0 0.0
    %113 = vmatprep.subr.mxu0 0.0
    %114 = vmatpush2.xpose.msra.mxu0 0.0
    %115 = vmatprep.subr.mxu0 0.0
    %116 = vmatpush2.xpose.msra.mxu0 0.0
    %117 = vmatprep.subr.mxu0 0.0
    %118 = vmatpush2.xpose.msra.mxu0 0.0
    %119 = vmatprep.mubr.f32.mxu0 0.0
    %120 = vmatmul.mubr.f32.gmra.mxu0 %v50
    %v121 = vpop.f32.mrf.mxu0
    %v122 = vadd.f32 %v46, %v121
    %v123 = vpop.f32.mrf.mxu0
    %124 = vdwg.mxu0
    %vm125 = vcmask 64512
    %126 = vst.msk [vmem:[#allocation7] sm:$0xff] %vm125, %v122
    // Predicated region
    $region22: #{tpu_custom_call.1} parent=1 // pred_check
      _
    $region23: #{tpu_custom_call.1} parent=1 // pred_check_branch
      %128 = sbr.rel (0) target = $region25
    $region24: #{tpu_custom_call.1} parent=1 // pred_region
      %s130 = ssub.s32 128, 128
      %131 = vsyncadd [#allocation4], %s130
      %s133 = sshll.u32 [#allocation7], 4
      %s134 = int_to_ptr.vmem [resolvable:$true] %s133
      %136 = dma.vmem_to_hbm [thread:$0]  %s134, 128, %s3, [#allocation4]
    $region25: #{tpu_custom_call.1} parent=1 // pred_fallthru
      _
    // Predicated region
    $region26: #{tpu_custom_call.1} parent=1 // pred_check
      _
    $region27: #{tpu_custom_call.1} parent=1 // pred_check_branch
      %138 = sbr.rel (0) target = $region29
    $region28: #{tpu_custom_call.1} parent=1 // pred_region
      %139 = dma.done [#allocation4], 128
    $region29: #{tpu_custom_call.1} parent=1 // pred_fallthru
      _
    %140 = vsyncpa [#allocation3], 1
    %141 = vsyncpa [#allocation6], 1
    %142 = vsyncpa [#allocation4], 1

</llo_original>
